<compile_context>
chip_gen: v6e
topology: v6e:2x2x1
jax: 0.10.0
libtpu: 0.0.40
codegen_flags: <defaults>
</compile_context>

<pallas_src>
import jax
import jax.numpy as jnp
from jax import lax
from jax.experimental import pallas as pl
from jax.experimental.pallas import tpu as pltpu

EPS = 1e-8          # torch.cosine_similarity eps (applied per-row here; see note)
SIM_THRESH = 0.1    # att_coef threshold: sim[sim < 0.1] = 0


# ----------------------------------------------------------------------------
# in-kernel helpers
# ----------------------------------------------------------------------------
def _cosine_weights_t(feat, adjT_bool):
    """Thresholded per-edge cosine similarity as a dense weighted adjacency,
    laid out transposed: result[dst, src].

    Rows are pre-normalized so one MXU gram matmul yields the cosine directly
    (no N^2 divide, no [N,1]->[1,N] transpose).  Eps clamp is per-row instead
    of torch's per-pair max(||a||*||b||, eps); only zero-norm rows differ and
    those pairs fall below the 0.1 threshold anyway, so they are zero in both.
    sim is symmetric, so thresholding against adjT gives the transposed
    weighted adjacency without ever materializing the untransposed one.
    """
    sq = jnp.sum(feat * feat, axis=-1, keepdims=True)            # [N, 1]
    xn = feat * lax.rsqrt(jnp.maximum(sq, EPS * EPS))            # row-normalized
    sim = lax.dot_general(xn, xn, (((1,), (1,)), ((), ())),
                          preferred_element_type=jnp.float32)    # [N, N], symmetric
    keep = jnp.logical_and(adjT_bool, sim >= SIM_THRESH)
    return jnp.where(keep, sim, 0.0)                             # aT[dst, src]


def _gcn_conv_t(xw, aT, no_self):
    """GCNConv aggregation (add_remaining_self_loops + symmetric norm) with the
    adjacency given transposed (aT[dst, src]) and the normalization folded into
    the small [N, out] operand:

      deg[node]  = sum_src aT[node, src] + no_self[node]        (lane reduce)
      y          = xw * dinv
      out[dst]   = dinv[dst] * ( (aT @ y)[dst] + no_self[dst] * y[dst] )
    """
    deg = jnp.sum(aT, axis=1, keepdims=True) + no_self           # [N, 1]
    dinv = jnp.where(deg > 0.0, lax.rsqrt(deg), 0.0)             # [N, 1]
    y = xw * dinv                                                # scale by dinv[src]
    agg = jnp.dot(aT, y, preferred_element_type=jnp.float32)     # native (1,0) MXU contraction
    return dinv * (agg + no_self * y)


# ----------------------------------------------------------------------------
# fused kernel
# ----------------------------------------------------------------------------
def gnnguard_kernel(x_ref, adjT_ref, no_self_ref, w1_ref, b1_ref, w2_ref, b2_ref,
                    out_ref):
    x = x_ref[...]                                   # [N, F] f32
    adjT = adjT_ref[...] != 0                        # int8 -> bool, widened once
    no_self = no_self_ref[...]                       # [N, 1] f32 (1 where no self loop)

    # ---- layer 1: att_coef(x), GCNConv, relu ----
    a1T = _cosine_weights_t(x, adjT)
    xw1 = jnp.dot(x, w1_ref[...], preferred_element_type=jnp.float32)
    h = _gcn_conv_t(xw1, a1T, no_self) + b1_ref[...]
    h = jnp.maximum(h, 0.0)

    # ---- layer 2: att_coef(h), GCNConv ----
    a2T = _cosine_weights_t(h, adjT)
    # TODO(synk): F.dropout(p=0.5, training=True) omitted; inference semantics.
    xw2 = jnp.dot(h, w2_ref[...], preferred_element_type=jnp.float32)
    out = _gcn_conv_t(xw2, a2T, no_self) + b2_ref[...]

    out_ref[...] = out.astype(out_ref.dtype)


# ----------------------------------------------------------------------------
# wrapper (glue: scatter-free densification, has_self, lane padding)
# ----------------------------------------------------------------------------
def gnnguard_forward(x, edge_index, w1, b1, w2, b2):
    """x: [N, F] f32, edge_index: [2, E] int32, GCNConv weights in [in, out] layout.

    Directed-safe: works for arbitrary edge_index (no symmetry assumption).
    """
    n = x.shape[0]
    c = w2.shape[1]
    c_pad = ((c + 127) // 128) * 128                 # lane-dense output width

    # Scatter-free densification: one-hot matmul instead of per-edge XLA scatter.
    # counts_t[dst, src] = number of (src, dst) edges; adjacency is shipped
    # pre-transposed so the kernel's aggregation is a native MXU contraction.
    # TODO(synk): duplicate (src,dst) edges collapse to weight 1; differs on multigraphs.
    src_oh = jax.nn.one_hot(edge_index[0], n, dtype=jnp.float32)  # [E, N]
    dst_oh = jax.nn.one_hot(edge_index[1], n, dtype=jnp.float32)  # [E, N]
    counts_t = jnp.dot(dst_oh.T, src_oh)                          # [N, N] counts[dst, src]
    adjT_i8 = (counts_t > 0.0).astype(jnp.int8)

    # no_self[i] = 1.0 iff node i has NO explicit self loop (diag of counts)
    has_self = (jnp.diagonal(counts_t) > 0.0).astype(jnp.float32)
    no_self = (1.0 - has_self).reshape(n, 1)

    # pad class dim so the kernel's output store is lane-dense (128 lanes)
    w2p = jnp.pad(w2, ((0, 0), (0, c_pad - c)))
    b2p = jnp.pad(b2.reshape(1, -1), ((0, 0), (0, c_pad - c)))

    vmem_spec = pl.BlockSpec(memory_space=pltpu.MemorySpace.VMEM)

    out = pl.pallas_call(
        gnnguard_kernel,
        out_shape=jax.ShapeDtypeStruct((n, c_pad), jnp.float32),
        in_specs=[vmem_spec] * 7,
        out_specs=vmem_spec,
    )(x, adjT_i8, no_self, w1, b1.reshape(1, -1), w2p, b2p)

    return out[:, :c]


# ----------------------------------------------------------------------------
# pure-JAX reference with the ORIGINAL (unoptimized) dense formulation
# ----------------------------------------------------------------------------
def _reference_forward(x, edge_index, w1, b1, w2, b2):
    n = x.shape[0]
    adj = jnp.zeros((n, n), jnp.float32).at[edge_index[0], edge_index[1]].set(1.0)

    def att(f):
        s = f @ f.T
        nrm = jnp.sqrt(jnp.sum(f * f, axis=-1, keepdims=True))
        sim = s / jnp.maximum(nrm * nrm.T, EPS)
        sim = jnp.where(sim < SIM_THRESH, 0.0, sim)
        return sim * adj

    def conv(f, a, w, b):
        eye = jnp.eye(n, dtype=jnp.float32)
        has_self = jnp.sum(adj * eye, axis=0, keepdims=True)
        a_hat = a + eye * (1.0 - has_self)
        deg = jnp.sum(a_hat, axis=0, keepdims=True)
        dinv = jnp.where(deg > 0.0, lax.rsqrt(deg), 0.0)
        a_norm = dinv.T * a_hat * dinv
        return a_norm.T @ (f @ w) + b.reshape(1, -1)

    h = jnp.maximum(conv(x, att(x), w1, b1), 0.0)
    return conv(h, att(h), w2, b2)


if __name__ == "__main__":
    # small graph consistent with the module: N nodes, n_feat=32, n_hid=32, n_class=8
    N, F, H, C, E = 64, 32, 32, 8, 256

    key = jax.random.PRNGKey(0)
    kx, ke, kw1, kb1, kw2, kb2 = jax.random.split(key, 6)

    x = jax.random.normal(kx, (N, F), dtype=jnp.float32)
    src = jax.random.randint(ke, (E,), 0, N, dtype=jnp.int32)
    dst = jax.random.randint(jax.random.fold_in(ke, 1), (E,), 0, N, dtype=jnp.int32)

    # GCNConv.lin computes x @ W^T; here W is stored already in [in, out] layout.
    w1 = jax.random.normal(kw1, (F, H), dtype=jnp.float32) * (1.0 / jnp.sqrt(F))
    b1 = jax.random.normal(kb1, (H,), dtype=jnp.float32) * 0.01
    w2 = jax.random.normal(kw2, (H, C), dtype=jnp.float32) * (1.0 / jnp.sqrt(H))
    b2 = jax.random.normal(kb2, (C,), dtype=jnp.float32) * 0.01

    fwd = jax.jit(gnnguard_forward)

    # undirected graph (typical GCN input; no explicit self-loops)
    ei_undirected = jnp.stack([jnp.concatenate([src, dst]),
                               jnp.concatenate([dst, src])])
    ref_u = _reference_forward(x, ei_undirected, w1, b1, w2, b2)
    out_u = jax.block_until_ready(fwd(x, ei_undirected, w1, b1, w2, b2))
    assert out_u.shape == (N, C)
    assert jnp.allclose(out_u, ref_u, atol=1e-4, rtol=1e-4), "undirected mismatch"

    # directed graph: exercises the directed-safe (transposed-adjacency) path
    ei_directed = jnp.stack([src, dst])
    ref_d = _reference_forward(x, ei_directed, w1, b1, w2, b2)
    out_d = jax.block_until_ready(fwd(x, ei_directed, w1, b1, w2, b2))
    assert out_d.shape == (N, C)
    assert jnp.allclose(out_d, ref_d, atol=1e-4, rtol=1e-4), "directed mismatch"

    print("KERNEL_OK")
</pallas_src>

<mosaic_0001>
module attributes {stable_mosaic.version = 11 : i64} {
  func.func @gnnguard_kernel(%arg0: memref<64x32xf32, #tpu.memory_space<vmem>>, %arg1: memref<64x64xi8, #tpu.memory_space<vmem>>, %arg2: memref<64x1xf32, #tpu.memory_space<vmem>>, %arg3: memref<32x32xf32, #tpu.memory_space<vmem>>, %arg4: memref<1x32xf32, #tpu.memory_space<vmem>>, %arg5: memref<32x128xf32, #tpu.memory_space<vmem>>, %arg6: memref<1x128xf32, #tpu.memory_space<vmem>>, %arg7: memref<64x128xf32, #tpu.memory_space<vmem>>) attributes {dimension_semantics = [], scalar_prefetch = 0 : i64, scratch_operands = 0 : i64, tpu.core_type = #tpu.core_type<tc>} {
    %c0 = arith.constant 0 : index
    %c0_0 = arith.constant 0 : index
    %0 = vector.load %arg0[%c0, %c0_0] : memref<64x32xf32, #tpu.memory_space<vmem>>, vector<64x32xf32>
    %c0_1 = arith.constant 0 : index
    %c0_2 = arith.constant 0 : index
    %1 = vector.load %arg1[%c0_1, %c0_2] : memref<64x64xi8, #tpu.memory_space<vmem>>, vector<64x64xi8>
    %c0_i8 = arith.constant 0 : i8
    %2 = vector.broadcast %c0_i8 : i8 to vector<64x64xi8>
    %3 = arith.cmpi ne, %1, %2 : vector<64x64xi8>
    %c0_3 = arith.constant 0 : index
    %c0_4 = arith.constant 0 : index
    %4 = vector.load %arg2[%c0_3, %c0_4] : memref<64x1xf32, #tpu.memory_space<vmem>>, vector<64x1xf32>
    %5 = arith.mulf %0, %0 : vector<64x32xf32>
    %cst = arith.constant dense<0.000000e+00> : vector<64xf32>
    %6 = vector.multi_reduction <add>, %5, %cst [1] : vector<64x32xf32> to vector<64xf32>
    %7 = vector.shape_cast %6 : vector<64xf32> to vector<64x1xf32>
    %cst_5 = arith.constant 1.000000e-16 : f32
    %8 = vector.broadcast %cst_5 : f32 to vector<64x1xf32>
    %9 = arith.maximumf %7, %8 : vector<64x1xf32>
    %10 = math.rsqrt %9 : vector<64x1xf32>
    %11 = vector.broadcast %10 : vector<64x1xf32> to vector<64x32xf32>
    %12 = arith.mulf %0, %11 : vector<64x32xf32>
    %cst_6 = arith.constant dense<0.000000e+00> : vector<64x64xf32>
    %13 = tpu.matmul %12, %12, %cst_6 {dimension_numbers = #tpu.dot_dimension_numbers<[1], [1], [0], [0], [0, 0, 1, 0], [], []>} : vector<64x32xf32>, vector<64x32xf32>, vector<64x64xf32> -> vector<64x64xf32>
    %cst_7 = arith.constant 1.000000e-01 : f32
    %14 = vector.broadcast %cst_7 : f32 to vector<64x64xf32>
    %15 = arith.cmpf oge, %13, %14 : vector<64x64xf32>
    %16 = arith.andi %3, %15 : vector<64x64xi1>
    %cst_8 = arith.constant 0.000000e+00 : f32
    %17 = vector.broadcast %cst_8 : f32 to vector<64x64xf32>
    %18 = arith.select %16, %13, %17 : vector<64x64xi1>, vector<64x64xf32>
    %c0_9 = arith.constant 0 : index
    %c0_10 = arith.constant 0 : index
    %19 = vector.load %arg3[%c0_9, %c0_10] : memref<32x32xf32, #tpu.memory_space<vmem>>, vector<32x32xf32>
    %cst_11 = arith.constant dense<0.000000e+00> : vector<64x32xf32>
    %20 = tpu.matmul %0, %19, %cst_11 {dimension_numbers = #tpu.dot_dimension_numbers<[1], [0], [0], [1], [0, 0, 1, 1], [], []>} : vector<64x32xf32>, vector<32x32xf32>, vector<64x32xf32> -> vector<64x32xf32>
    %cst_12 = arith.constant dense<0.000000e+00> : vector<64xf32>
    %21 = vector.multi_reduction <add>, %18, %cst_12 [1] : vector<64x64xf32> to vector<64xf32>
    %22 = vector.shape_cast %21 : vector<64xf32> to vector<64x1xf32>
    %23 = arith.addf %22, %4 : vector<64x1xf32>
    %cst_13 = arith.constant 0.000000e+00 : f32
    %24 = vector.broadcast %cst_13 : f32 to vector<64x1xf32>
    %25 = arith.cmpf ogt, %23, %24 : vector<64x1xf32>
    %26 = math.rsqrt %23 : vector<64x1xf32>
    %cst_14 = arith.constant 0.000000e+00 : f32
    %27 = vector.broadcast %cst_14 : f32 to vector<64x1xf32>
    %28 = arith.select %25, %26, %27 : vector<64x1xi1>, vector<64x1xf32>
    %29 = vector.broadcast %28 : vector<64x1xf32> to vector<64x32xf32>
    %30 = arith.mulf %20, %29 : vector<64x32xf32>
    %cst_15 = arith.constant dense<0.000000e+00> : vector<64x32xf32>
    %31 = tpu.matmul %18, %30, %cst_15 {dimension_numbers = #tpu.dot_dimension_numbers<[1], [0], [0], [1], [0, 0, 1, 1], [], []>} : vector<64x64xf32>, vector<64x32xf32>, vector<64x32xf32> -> vector<64x32xf32>
    %32 = vector.broadcast %4 : vector<64x1xf32> to vector<64x32xf32>
    %33 = arith.mulf %32, %30 : vector<64x32xf32>
    %34 = arith.addf %31, %33 : vector<64x32xf32>
    %35 = vector.broadcast %28 : vector<64x1xf32> to vector<64x32xf32>
    %36 = arith.mulf %35, %34 : vector<64x32xf32>
    %c0_16 = arith.constant 0 : index
    %c0_17 = arith.constant 0 : index
    %37 = vector.load %arg4[%c0_16, %c0_17] : memref<1x32xf32, #tpu.memory_space<vmem>>, vector<1x32xf32>
    %38 = vector.broadcast %37 : vector<1x32xf32> to vector<64x32xf32>
    %39 = arith.addf %36, %38 : vector<64x32xf32>
    %cst_18 = arith.constant 0.000000e+00 : f32
    %40 = vector.broadcast %cst_18 : f32 to vector<64x32xf32>
    %41 = arith.maximumf %39, %40 : vector<64x32xf32>
    %42 = arith.mulf %41, %41 : vector<64x32xf32>
    %cst_19 = arith.constant dense<0.000000e+00> : vector<64xf32>
    %43 = vector.multi_reduction <add>, %42, %cst_19 [1] : vector<64x32xf32> to vector<64xf32>
    %44 = vector.shape_cast %43 : vector<64xf32> to vector<64x1xf32>
    %cst_20 = arith.constant 1.000000e-16 : f32
    %45 = vector.broadcast %cst_20 : f32 to vector<64x1xf32>
    %46 = arith.maximumf %44, %45 : vector<64x1xf32>
    %47 = math.rsqrt %46 : vector<64x1xf32>
    %48 = vector.broadcast %47 : vector<64x1xf32> to vector<64x32xf32>
    %49 = arith.mulf %41, %48 : vector<64x32xf32>
    %cst_21 = arith.constant dense<0.000000e+00> : vector<64x64xf32>
    %50 = tpu.matmul %49, %49, %cst_21 {dimension_numbers = #tpu.dot_dimension_numbers<[1], [1], [0], [0], [0, 0, 1, 0], [], []>} : vector<64x32xf32>, vector<64x32xf32>, vector<64x64xf32> -> vector<64x64xf32>
    %cst_22 = arith.constant 1.000000e-01 : f32
    %51 = vector.broadcast %cst_22 : f32 to vector<64x64xf32>
    %52 = arith.cmpf oge, %50, %51 : vector<64x64xf32>
    %53 = arith.andi %3, %52 : vector<64x64xi1>
    %cst_23 = arith.constant 0.000000e+00 : f32
    %54 = vector.broadcast %cst_23 : f32 to vector<64x64xf32>
    %55 = arith.select %53, %50, %54 : vector<64x64xi1>, vector<64x64xf32>
    %c0_24 = arith.constant 0 : index
    %c0_25 = arith.constant 0 : index
    %56 = vector.load %arg5[%c0_24, %c0_25] : memref<32x128xf32, #tpu.memory_space<vmem>>, vector<32x128xf32>
    %cst_26 = arith.constant dense<0.000000e+00> : vector<64x128xf32>
    %57 = tpu.matmul %41, %56, %cst_26 {dimension_numbers = #tpu.dot_dimension_numbers<[1], [0], [0], [1], [0, 0, 1, 1], [], []>} : vector<64x32xf32>, vector<32x128xf32>, vector<64x128xf32> -> vector<64x128xf32>
    %cst_27 = arith.constant dense<0.000000e+00> : vector<64xf32>
    %58 = vector.multi_reduction <add>, %55, %cst_27 [1] : vector<64x64xf32> to vector<64xf32>
    %59 = vector.shape_cast %58 : vector<64xf32> to vector<64x1xf32>
    %60 = arith.addf %59, %4 : vector<64x1xf32>
    %cst_28 = arith.constant 0.000000e+00 : f32
    %61 = vector.broadcast %cst_28 : f32 to vector<64x1xf32>
    %62 = arith.cmpf ogt, %60, %61 : vector<64x1xf32>
    %63 = math.rsqrt %60 : vector<64x1xf32>
    %cst_29 = arith.constant 0.000000e+00 : f32
    %64 = vector.broadcast %cst_29 : f32 to vector<64x1xf32>
    %65 = arith.select %62, %63, %64 : vector<64x1xi1>, vector<64x1xf32>
    %66 = vector.broadcast %65 : vector<64x1xf32> to vector<64x128xf32>
    %67 = arith.mulf %57, %66 : vector<64x128xf32>
    %cst_30 = arith.constant dense<0.000000e+00> : vector<64x128xf32>
    %68 = tpu.matmul %55, %67, %cst_30 {dimension_numbers = #tpu.dot_dimension_numbers<[1], [0], [0], [1], [0, 0, 1, 1], [], []>} : vector<64x64xf32>, vector<64x128xf32>, vector<64x128xf32> -> vector<64x128xf32>
    %69 = vector.broadcast %4 : vector<64x1xf32> to vector<64x128xf32>
    %70 = arith.mulf %69, %67 : vector<64x128xf32>
    %71 = arith.addf %68, %70 : vector<64x128xf32>
    %72 = vector.broadcast %65 : vector<64x1xf32> to vector<64x128xf32>
    %73 = arith.mulf %72, %71 : vector<64x128xf32>
    %c0_31 = arith.constant 0 : index
    %c0_32 = arith.constant 0 : index
    %74 = vector.load %arg6[%c0_31, %c0_32] : memref<1x128xf32, #tpu.memory_space<vmem>>, vector<1x128xf32>
    %75 = vector.broadcast %74 : vector<1x128xf32> to vector<64x128xf32>
    %76 = arith.addf %73, %75 : vector<64x128xf32>
    %c0_33 = arith.constant 0 : index
    %c0_34 = arith.constant 0 : index
    %77 = vector.load %arg7[%c0_33, %c0_34] : memref<64x128xf32, #tpu.memory_space<vmem>>, vector<64x128xf32>
    tpu.vector_store %arg7[%c0_33, %c0_34], %76 {strides = array<i32>} : memref<64x128xf32, #tpu.memory_space<vmem>>, vector<64x128xf32>,
    return
  }
}

</mosaic_0001>

<llo_original>
// kernel: gnnguard_forward.1
$region0: #{gnnguard_forward.1}
  #allocation0 [shape = 'u32[]', space=smem, size = 0x4, offset = 0x4, fixed_abs, tag = 'smem constant byte address 0x4 - core index']
  #allocation1 [shape = 'u32[144,128]{1,0:T(1,128)}', space=vmem, size = 0x12000, scoped, tag = 'internal scratch']
  %s0 = inlined_call_operand.vmem [shape: f32[64,32], index: 0, kind: input, shape index: {}]
  %s1 = inlined_call_operand.vmem [shape: s8[64,64], index: 1, kind: input, shape index: {}]
  %s2 = inlined_call_operand.vmem [shape: f32[64,1], index: 2, kind: input, shape index: {}]
  %s3 = inlined_call_operand.vmem [shape: f32[32,32], index: 3, kind: input, shape index: {}]
  %s4 = inlined_call_operand.vmem [shape: f32[1,32], index: 4, kind: input, shape index: {}]
  %s5 = inlined_call_operand.vmem [shape: f32[32,128], index: 5, kind: input, shape index: {}]
  %s6 = inlined_call_operand.vmem [shape: f32[1,128], index: 6, kind: input, shape index: {}]
  %s7 = inlined_call_operand.vmem [shape: f32[64,128], index: 7, kind: output, shape index: {}]
  %s8 = sld [smem:[#allocation0]]
  $region38: #{gnnguard_forward.1} parent=0
    _
  %s10 = ssub.s32 1, %s8
  %s11 = scalar_select 0, %s10, %s8
  // Predicated region
  $region2: #{gnnguard_forward.1} parent=0 // pred_check
    _
  $region3: #{gnnguard_forward.1} parent=0 // pred_check_branch
    %13 = sbr.rel (0) target = $region5
  $region4: #{gnnguard_forward.1} parent=0 // pred_region
    _
  $region5: #{gnnguard_forward.1} parent=0 // pred_fallthru
    _
  // Predicated region
  $region6: #{gnnguard_forward.1} parent=0 // pred_check
    _
  $region7: #{gnnguard_forward.1} parent=0 // pred_check_branch
    %15 = sbr.rel (0) target = $region9
  $region8: #{gnnguard_forward.1} parent=0 // pred_region
    _
  $region9: #{gnnguard_forward.1} parent=0 // pred_fallthru
    _
  // Predicated region
  $region10: #{gnnguard_forward.1} parent=0 // pred_check
    _
  $region11: #{gnnguard_forward.1} parent=0 // pred_check_branch
    %17 = sbr.rel (0) target = $region13
  $region12: #{gnnguard_forward.1} parent=0 // pred_region
    _
  $region13: #{gnnguard_forward.1} parent=0 // pred_fallthru
    _
  // Predicated region
  $region14: #{gnnguard_forward.1} parent=0 // pred_check
    _
  $region15: #{gnnguard_forward.1} parent=0 // pred_check_branch
    %19 = sbr.rel (0) target = $region17
  $region16: #{gnnguard_forward.1} parent=0 // pred_region
    _
  $region17: #{gnnguard_forward.1} parent=0 // pred_fallthru
    _
  // Predicated region
  $region18: #{gnnguard_forward.1} parent=0 // pred_check
    _
  $region19: #{gnnguard_forward.1} parent=0 // pred_check_branch
    %21 = sbr.rel (0) target = $region21
  $region20: #{gnnguard_forward.1} parent=0 // pred_region
    _
  $region21: #{gnnguard_forward.1} parent=0 // pred_fallthru
    _
  // Predicated region
  $region22: #{gnnguard_forward.1} parent=0 // pred_check
    _
  $region23: #{gnnguard_forward.1} parent=0 // pred_check_branch
    %23 = sbr.rel (0) target = $region25
  $region24: #{gnnguard_forward.1} parent=0 // pred_region
    _
  $region25: #{gnnguard_forward.1} parent=0 // pred_fallthru
    _
  // Predicated region
  $region26: #{gnnguard_forward.1} parent=0 // pred_check
    _
  $region27: #{gnnguard_forward.1} parent=0 // pred_check_branch
    %25 = sbr.rel (0) target = $region29
  $region28: #{gnnguard_forward.1} parent=0 // pred_region
    _
  $region29: #{gnnguard_forward.1} parent=0 // pred_fallthru
    _
  %v28 = vld [vmem:[%s0] sm:$0xff]
  %v29 = vld [vmem:[%s0 + $0x8] sm:$0xff]
  %v30 = vld [vmem:[%s0 + $0x10] sm:$0xff]
  %v31 = vld [vmem:[%s0 + $0x18] sm:$0xff]
  %v32 = vld [vmem:[%s0 + $0x20] sm:$0xff]
  %v33 = vld [vmem:[%s0 + $0x28] sm:$0xff]
  %v34 = vld [vmem:[%s0 + $0x30] sm:$0xff]
  %v35 = vld [vmem:[%s0 + $0x38] sm:$0xff]
  %v36 = vld [vmem:[%s1] sm:$0xff]
  %v37 = vld [vmem:[%s1 + $0x8] sm:$0xff]
  %vm38 = vnez %v36
  %vm39 = vnez %v37
  %v40 = vld [vmem:[%s2] sm:$0xff]
  %v41 = vld [vmem:[%s2 + $0x8] sm:$0xff]
  %v42 = vld [vmem:[%s2 + $0x10] sm:$0xff]
  %v43 = vld [vmem:[%s2 + $0x18] sm:$0xff]
  %v44 = vld [vmem:[%s2 + $0x20] sm:$0xff]
  %v45 = vld [vmem:[%s2 + $0x28] sm:$0xff]
  %v46 = vld [vmem:[%s2 + $0x30] sm:$0xff]
  %v47 = vld [vmem:[%s2 + $0x38] sm:$0xff]
  %v48 = vmul.f32 %v28, %v28
  %v49 = vmul.f32 %v29, %v29
  %v50 = vmul.f32 %v30, %v30
  %v51 = vmul.f32 %v31, %v31
  %v52 = vmul.f32 %v32, %v32
  %v53 = vmul.f32 %v33, %v33
  %v54 = vmul.f32 %v34, %v34
  %v55 = vmul.f32 %v35, %v35
  %vm56 = vcmask 261120
  %v57 = vsel %vm56, %v48, 0.0
  %58 = vadd.xlane.f32.xlu0 %v57
  %v59 = vpop.xlane.xlu0 %58
  %v60 = vsel %vm56, %v49, 0.0
  %61 = vadd.xlane.f32.xlu0 %v60
  %v62 = vpop.xlane.xlu0 %61
  %v63 = vsel %vm56, %v50, 0.0
  %64 = vadd.xlane.f32.xlu0 %v63
  %v65 = vpop.xlane.xlu0 %64
  %v66 = vsel %vm56, %v51, 0.0
  %67 = vadd.xlane.f32.xlu0 %v66
  %v68 = vpop.xlane.xlu0 %67
  %v69 = vsel %vm56, %v52, 0.0
  %70 = vadd.xlane.f32.xlu0 %v69
  %v71 = vpop.xlane.xlu0 %70
  %v72 = vsel %vm56, %v53, 0.0
  %73 = vadd.xlane.f32.xlu0 %v72
  %v74 = vpop.xlane.xlu0 %73
  %v75 = vsel %vm56, %v54, 0.0
  %76 = vadd.xlane.f32.xlu0 %v75
  %v77 = vpop.xlane.xlu0 %76
  %v78 = vsel %vm56, %v55, 0.0
  %79 = vadd.xlane.f32.xlu0 %v78
  %v80 = vpop.xlane.xlu0 %79
  %v81 = vmax.f32 %v59, 1e-16
  %v82 = vmax.f32 %v62, 1e-16
  %v83 = vmax.f32 %v65, 1e-16
  %v84 = vmax.f32 %v68, 1e-16
  %v85 = vmax.f32 %v71, 1e-16
  %v86 = vmax.f32 %v74, 1e-16
  %v87 = vmax.f32 %v77, 1e-16
  %v88 = vmax.f32 %v80, 1e-16
  %v89 = vrsqrt.pop %v81
  %v90 = vrsqrt.pop %v82
  %v91 = vrsqrt.pop %v83
  %v92 = vrsqrt.pop %v84
  %v93 = vrsqrt.pop %v85
  %v94 = vrsqrt.pop %v86
  %v95 = vrsqrt.pop %v87
  %v96 = vrsqrt.pop %v88
  %v97 = vmul.f32 %v28, %v89
  %v98 = vmul.f32 %v29, %v90
  %v99 = vmul.f32 %v30, %v91
  %v100 = vmul.f32 %v31, %v92
  %v101 = vmul.f32 %v32, %v93
  %v102 = vmul.f32 %v33, %v94
  %v103 = vmul.f32 %v34, %v95
  %v104 = vmul.f32 %v35, %v96
  %v106 = vsel %vm56, %v97, 0
  %v109 = vsel %vm56, %v98, 0
  %v112 = vsel %vm56, %v99, 0
  %v115 = vsel %vm56, %v100, 0
  %v118 = vsel %vm56, %v101, 0
  %v121 = vsel %vm56, %v102, 0
  %v124 = vsel %vm56, %v103, 0
  %v127 = vsel %vm56, %v104, 0
  %129 = vmatprep.subr.mxu0 0.0
  %130 = vmatpush1.xpose.msra.mxu0 0.0
  %131 = vmatprep.subr.mxu0 0.0
  %132 = vmatpush1.xpose.msra.mxu0 0.0
  %133 = vmatprep.subr.mxu0 0.0
  %134 = vmatpush1.xpose.msra.mxu0 0.0
  %135 = vmatprep.subr.mxu0 0.0
  %136 = vmatpush1.xpose.msra.mxu0 0.0
  %137 = vmatprep.subr.mxu0 0.0
  %138 = vmatpush1.xpose.msra.mxu0 0.0
  %139 = vmatprep.subr.mxu0 0.0
  %140 = vmatpush1.xpose.msra.mxu0 0.0
  %141 = vmatprep.subr.mxu0 0.0
  %142 = vmatpush1.xpose.msra.mxu0 0.0
  %143 = vmatprep.subr.mxu0 0.0
  %144 = vmatpush1.xpose.msra.mxu0 0.0
  %145 = vmatprep.subr.mxu0 0.0
  %146 = vmatpush1.xpose.msra.mxu0 %v127
  %147 = vmatprep.subr.mxu0 0.0
  %148 = vmatpush1.xpose.msra.mxu0 %v124
  %149 = vmatprep.subr.mxu0 0.0
  %150 = vmatpush1.xpose.msra.mxu0 %v121
  %151 = vmatprep.subr.mxu0 0.0
  %152 = vmatpush1.xpose.msra.mxu0 %v118
  %153 = vmatprep.subr.mxu0 0.0
  %154 = vmatpush1.xpose.msra.mxu0 %v115
  %155 = vmatprep.subr.mxu0 0.0
  %156 = vmatpush1.xpose.msra.mxu0 %v112
  %157 = vmatprep.subr.mxu0 0.0
  %158 = vmatpush1.xpose.msra.mxu0 %v109
  %159 = vmatprep.subr.mxu0 0.0
  %160 = vmatpush1.xpose.msra.mxu0 %v106
  %161 = vmatprep.subr.mxu0 0.0
  %162 = vmatpush2.xpose.msra.mxu0 0.0
  %163 = vmatprep.subr.mxu0 0.0
  %164 = vmatpush2.xpose.msra.mxu0 0.0
  %165 = vmatprep.subr.mxu0 0.0
  %166 = vmatpush2.xpose.msra.mxu0 0.0
  %167 = vmatprep.subr.mxu0 0.0
  %168 = vmatpush2.xpose.msra.mxu0 0.0
  %169 = vmatprep.subr.mxu0 0.0
  %170 = vmatpush2.xpose.msra.mxu0 0.0
  %171 = vmatprep.subr.mxu0 0.0
  %172 = vmatpush2.xpose.msra.mxu0 0.0
  %173 = vmatprep.subr.mxu0 0.0
  %174 = vmatpush2.xpose.msra.mxu0 0.0
  %175 = vmatprep.subr.mxu0 0.0
  %176 = vmatpush2.xpose.msra.mxu0 0.0
  %177 = vmatprep.subr.mxu0 0.0
  %178 = vmatpush2.xpose.msra.mxu0 0.0
  %179 = vmatprep.subr.mxu0 0.0
  %180 = vmatpush2.xpose.msra.mxu0 0.0
  %181 = vmatprep.subr.mxu0 0.0
  %182 = vmatpush2.xpose.msra.mxu0 0.0
  %183 = vmatprep.subr.mxu0 0.0
  %184 = vmatpush2.xpose.msra.mxu0 0.0
  %185 = vmatprep.subr.mxu0 0.0
  %186 = vmatpush2.xpose.msra.mxu0 0.0
  %187 = vmatprep.subr.mxu0 0.0
  %188 = vmatpush2.xpose.msra.mxu0 0.0
  %189 = vmatprep.subr.mxu0 0.0
  %190 = vmatpush2.xpose.msra.mxu0 0.0
  %191 = vmatprep.subr.mxu0 0.0
  %192 = vmatpush2.xpose.msra.mxu0 0.0
  %193 = vmatprep.mubr.f32.mxu0 0.0
  %194 = vmatmul.mubr.f32.gmra.mxu0 %v106
  %v195 = vpop.f32.mrf.mxu0
  %v196 = vadd.f32 0.0, %v195
  %v197 = vpop.f32.mrf.mxu0
  %198 = vmatprep.mubr.f32.mxu0 0.0
  %199 = vmatmul.mubr.f32.gmra.mxu0 %v109
  %v200 = vpop.f32.mrf.mxu0
  %v201 = vadd.f32 0.0, %v200
  %v202 = vpop.f32.mrf.mxu0
  %203 = vmatprep.mubr.f32.mxu0 0.0
  %204 = vmatmul.mubr.f32.gmra.mxu0 %v112
  %v205 = vpop.f32.mrf.mxu0
  %v206 = vadd.f32 0.0, %v205
  %v207 = vpop.f32.mrf.mxu0
  %208 = vmatprep.mubr.f32.mxu0 0.0
  %209 = vmatmul.mubr.f32.gmra.mxu0 %v115
  %v210 = vpop.f32.mrf.mxu0
  %v211 = vadd.f32 0.0, %v210
  %v212 = vpop.f32.mrf.mxu0
  %213 = vmatprep.mubr.f32.mxu0 0.0
  %214 = vmatmul.mubr.f32.gmra.mxu0 %v118
  %v215 = vpop.f32.mrf.mxu0
  %v216 = vadd.f32 0.0, %v215
  %v217 = vpop.f32.mrf.mxu0
  %218 = vmatprep.mubr.f32.mxu0 0.0
  %219 = vmatmul.mubr.f32.gmra.mxu0 %v121
  %v220 = vpop.f32.mrf.mxu0
  %v221 = vadd.f32 0.0, %v220
  %v222 = vpop.f32.mrf.mxu0
  %223 = vmatprep.mubr.f32.mxu0 0.0
  %224 = vmatmul.mubr.f32.gmra.mxu0 %v124
  %v225 = vpop.f32.mrf.mxu0
  %v226 = vadd.f32 0.0, %v225
  %v227 = vpop.f32.mrf.mxu0
  %228 = vmatprep.mubr.f32.mxu0 0.0
  %229 = vmatmul.mubr.f32.gmra.mxu0 %v127
  %v230 = vpop.f32.mrf.mxu0
  %v231 = vadd.f32 0.0, %v230
  %v232 = vpop.f32.mrf.mxu0
  %233 = vdwg.mxu0
  %vm234 = vcmp.ge.f32.partialorder %v196, 0.1
  %vm235 = vcmp.ge.f32.partialorder %v201, 0.1
  %vm236 = vcmp.ge.f32.partialorder %v206, 0.1
  %vm237 = vcmp.ge.f32.partialorder %v211, 0.1
  %vm238 = vcmp.ge.f32.partialorder %v216, 0.1
  %vm239 = vcmp.ge.f32.partialorder %v221, 0.1
  %vm240 = vcmp.ge.f32.partialorder %v226, 0.1
  %vm241 = vcmp.ge.f32.partialorder %v231, 0.1
  %vm242 = vmpackc.low %vm235, %vm234
  %vm243 = vmpackc.low %vm237, %vm236
  %vm244 = vmpackc.even %vm243, %vm242
  %vm245 = vmpackc.low %vm239, %vm238
  %vm246 = vmpackc.low %vm241, %vm240
  %vm247 = vmpackc.even %vm246, %vm245
  %vm248 = vmand %vm38, %vm244
  %vm249 = vmand %vm39, %vm247
  %v250 = vsel %vm248, 16843009, 0
  %v251 = vsel %vm249, 16843009, 0
  %v252 = vunpack.c.0.s8 %v250
  %v253 = vunpack.c.1.s8 %v250
  %v254 = vunpack.c.2.s8 %v250
  %v255 = vunpack.c.3.s8 %v250
  %v256 = vunpack.c.0.s8 %v251
  %v257 = vunpack.c.1.s8 %v251
  %v258 = vunpack.c.2.s8 %v251
  %v259 = vunpack.c.3.s8 %v251
  %v260 = vpack.c.b16 %v252, %v252
  %v261 = vpack.c.b8 %v260, %v260
  %v262 = vpack.c.b16 %v253, %v253
  %v263 = vpack.c.b8 %v262, %v262
  %v264 = vpack.c.b16 %v254, %v254
  %v265 = vpack.c.b8 %v264, %v264
  %v266 = vpack.c.b16 %v255, %v255
  %v267 = vpack.c.b8 %v266, %v266
  %v268 = vpack.c.b16 %v256, %v256
  %v269 = vpack.c.b8 %v268, %v268
  %v270 = vpack.c.b16 %v257, %v257
  %v271 = vpack.c.b8 %v270, %v270
  %v272 = vpack.c.b16 %v258, %v258
  %v273 = vpack.c.b8 %v272, %v272
  %v274 = vpack.c.b16 %v259, %v259
  %v275 = vpack.c.b8 %v274, %v274
  %vm276 = vnez %v261
  %vm277 = vnez %v263
  %vm278 = vnez %v265
  %vm279 = vnez %v267
  %vm280 = vnez %v269
  %vm281 = vnez %v271
  %vm282 = vnez %v273
  %vm283 = vnez %v275
  %v284 = vsel %vm276, 16843009, 0
  %v285 = vsel %vm277, 16843009, 0
  %v286 = vsel %vm278, 16843009, 0
  %v287 = vsel %vm279, 16843009, 0
  %v288 = vsel %vm280, 16843009, 0
  %v289 = vsel %vm281, 16843009, 0
  %v290 = vsel %vm282, 16843009, 0
  %v291 = vsel %vm283, 16843009, 0
  %v292 = vunpack.c.0.s8 %v284
  %v293 = vunpack.c.0.s8 %v285
  %v294 = vunpack.c.0.s8 %v286
  %v295 = vunpack.c.0.s8 %v287
  %v296 = vunpack.c.0.s8 %v288
  %v297 = vunpack.c.0.s8 %v289
  %v298 = vunpack.c.0.s8 %v290
  %v299 = vunpack.c.0.s8 %v291
  %vm300 = vcmp.ne.s32.totalorder %v292, 0
  %vm301 = vcmp.ne.s32.totalorder %v293, 0
  %vm302 = vcmp.ne.s32.totalorder %v294, 0
  %vm303 = vcmp.ne.s32.totalorder %v295, 0
  %vm304 = vcmp.ne.s32.totalorder %v296, 0
  %vm305 = vcmp.ne.s32.totalorder %v297, 0
  %vm306 = vcmp.ne.s32.totalorder %v298, 0
  %vm307 = vcmp.ne.s32.totalorder %v299, 0
  %v308 = vsel %vm300, %v196, 0.0
  %v309 = vsel %vm301, %v201, 0.0
  %v310 = vsel %vm302, %v206, 0.0
  %v311 = vsel %vm303, %v211, 0.0
  %v312 = vsel %vm304, %v216, 0.0
  %v313 = vsel %vm305, %v221, 0.0
  %v314 = vsel %vm306, %v226, 0.0
  %v315 = vsel %vm307, %v231, 0.0
  %v316 = vld [vmem:[%s3] sm:$0xff]
  %v317 = vld [vmem:[%s3 + $0x8] sm:$0xff]
  %v318 = vld [vmem:[%s3 + $0x10] sm:$0xff]
  %v319 = vld [vmem:[%s3 + $0x18] sm:$0xff]
  %v321 = vsel %vm56, %v28, 0
  %v324 = vsel %vm56, %v29, 0
  %v327 = vsel %vm56, %v30, 0
  %v330 = vsel %vm56, %v31, 0
  %v333 = vsel %vm56, %v32, 0
  %v336 = vsel %vm56, %v33, 0
  %v339 = vsel %vm56, %v34, 0
  %v342 = vsel %vm56, %v35, 0
  %344 = vmatprep.subr.mxu0 0.0
  %345 = vmatpush1.msra.mxu0 0.0
  %346 = vmatprep.subr.mxu0 0.0
  %347 = vmatpush1.msra.mxu0 0.0
  %348 = vmatprep.subr.mxu0 0.0
  %349 = vmatpush1.msra.mxu0 0.0
  %350 = vmatprep.subr.mxu0 0.0
  %351 = vmatpush1.msra.mxu0 0.0
  %352 = vmatprep.subr.mxu0 0.0
  %353 = vmatpush1.msra.mxu0 0.0
  %354 = vmatprep.subr.mxu0 0.0
  %355 = vmatpush1.msra.mxu0 0.0
  %356 = vmatprep.subr.mxu0 0.0
  %357 = vmatpush1.msra.mxu0 0.0
  %358 = vmatprep.subr.mxu0 0.0
  %359 = vmatpush1.msra.mxu0 0.0
  %360 = vmatprep.subr.mxu0 0.0
  %361 = vmatpush1.msra.mxu0 0.0
  %362 = vmatprep.subr.mxu0 0.0
  %363 = vmatpush1.msra.mxu0 0.0
  %364 = vmatprep.subr.mxu0 0.0
  %365 = vmatpush1.msra.mxu0 0.0
  %366 = vmatprep.subr.mxu0 0.0
  %367 = vmatpush1.msra.mxu0 0.0
  %368 = vmatprep.subr.mxu0 0.0
  %369 = vmatpush1.msra.mxu0 %v319
  %370 = vmatprep.subr.mxu0 0.0
  %371 = vmatpush1.msra.mxu0 %v318
  %372 = vmatprep.subr.mxu0 0.0
  %373 = vmatpush1.msra.mxu0 %v317
  %374 = vmatprep.subr.mxu0 0.0
  %375 = vmatpush1.msra.mxu0 %v316
  %376 = vmatprep.subr.mxu0 0.0
  %377 = vmatpush2.msra.mxu0 0.0
  %378 = vmatprep.subr.mxu0 0.0
  %379 = vmatpush2.msra.mxu0 0.0
  %380 = vmatprep.subr.mxu0 0.0
  %381 = vmatpush2.msra.mxu0 0.0
  %382 = vmatprep.subr.mxu0 0.0
  %383 = vmatpush2.msra.mxu0 0.0
  %384 = vmatprep.subr.mxu0 0.0
  %385 = vmatpush2.msra.mxu0 0.0
  %386 = vmatprep.subr.mxu0 0.0
  %387 = vmatpush2.msra.mxu0 0.0
  %388 = vmatprep.subr.mxu0 0.0
  %389 = vmatpush2.msra.mxu0 0.0
  %390 = vmatprep.subr.mxu0 0.0
  %391 = vmatpush2.msra.mxu0 0.0
  %392 = vmatprep.subr.mxu0 0.0
  %393 = vmatpush2.msra.mxu0 0.0
  %394 = vmatprep.subr.mxu0 0.0
  %395 = vmatpush2.msra.mxu0 0.0
  %396 = vmatprep.subr.mxu0 0.0
  %397 = vmatpush2.msra.mxu0 0.0
  %398 = vmatprep.subr.mxu0 0.0
  %399 = vmatpush2.msra.mxu0 0.0
  %400 = vmatprep.subr.mxu0 0.0
  %401 = vmatpush2.msra.mxu0 0.0
  %402 = vmatprep.subr.mxu0 0.0
  %403 = vmatpush2.msra.mxu0 0.0
  %404 = vmatprep.subr.mxu0 0.0
  %405 = vmatpush2.msra.mxu0 0.0
  %406 = vmatprep.subr.mxu0 0.0
  %407 = vmatpush2.msra.mxu0 0.0
  %408 = vmatprep.mubr.f32.mxu0 0.0
  %409 = vmatmul.mubr.f32.gmra.mxu0 %v321
  %v410 = vpop.f32.mrf.mxu0
  %v411 = vadd.f32 0.0, %v410
  %v412 = vpop.f32.mrf.mxu0
  %413 = vmatprep.mubr.f32.mxu0 0.0
  %414 = vmatmul.mubr.f32.gmra.mxu0 %v324
  %v415 = vpop.f32.mrf.mxu0
  %v416 = vadd.f32 0.0, %v415
  %v417 = vpop.f32.mrf.mxu0
  %418 = vmatprep.mubr.f32.mxu0 0.0
  %419 = vmatmul.mubr.f32.gmra.mxu0 %v327
  %v420 = vpop.f32.mrf.mxu0
  %v421 = vadd.f32 0.0, %v420
  %v422 = vpop.f32.mrf.mxu0
  %423 = vmatprep.mubr.f32.mxu0 0.0
  %424 = vmatmul.mubr.f32.gmra.mxu0 %v330
  %v425 = vpop.f32.mrf.mxu0
  %v426 = vadd.f32 0.0, %v425
  %v427 = vpop.f32.mrf.mxu0
  %428 = vmatprep.mubr.f32.mxu0 0.0
  %429 = vmatmul.mubr.f32.gmra.mxu0 %v333
  %v430 = vpop.f32.mrf.mxu0
  %v431 = vadd.f32 0.0, %v430
  %v432 = vpop.f32.mrf.mxu0
  %433 = vmatprep.mubr.f32.mxu0 0.0
  %434 = vmatmul.mubr.f32.gmra.mxu0 %v336
  %v435 = vpop.f32.mrf.mxu0
  %v436 = vadd.f32 0.0, %v435
  %v437 = vpop.f32.mrf.mxu0
  %438 = vmatprep.mubr.f32.mxu0 0.0
  %439 = vmatmul.mubr.f32.gmra.mxu0 %v339
  %v440 = vpop.f32.mrf.mxu0
  %v441 = vadd.f32 0.0, %v440
  %v442 = vpop.f32.mrf.mxu0
  %443 = vmatprep.mubr.f32.mxu0 0.0
  %444 = vmatmul.mubr.f32.gmra.mxu0 %v342
  %v445 = vpop.f32.mrf.mxu0
  %v446 = vadd.f32 0.0, %v445
  %v447 = vpop.f32.mrf.mxu0
  %448 = vdwg.mxu0
  %vm449 = vcmask 523264
  %v450 = vsel %vm449, %v308, 0.0
  %451 = vadd.xlane.f32.xlu0 %v450
  %v452 = vpop.xlane.xlu0 %451
  %v453 = vsel %vm449, %v309, 0.0
  %454 = vadd.xlane.f32.xlu0 %v453
  %v455 = vpop.xlane.xlu0 %454
  %v456 = vsel %vm449, %v310, 0.0
  %457 = vadd.xlane.f32.xlu0 %v456
  %v458 = vpop.xlane.xlu0 %457
  %v459 = vsel %vm449, %v311, 0.0
  %460 = vadd.xlane.f32.xlu0 %v459
  %v461 = vpop.xlane.xlu0 %460
  %v462 = vsel %vm449, %v312, 0.0
  %463 = vadd.xlane.f32.xlu0 %v462
  %v464 = vpop.xlane.xlu0 %463
  %v465 = vsel %vm449, %v313, 0.0
  %466 = vadd.xlane.f32.xlu0 %v465
  %v467 = vpop.xlane.xlu0 %466
  %v468 = vsel %vm449, %v314, 0.0
  %469 = vadd.xlane.f32.xlu0 %v468
  %v470 = vpop.xlane.xlu0 %469
  %v471 = vsel %vm449, %v315, 0.0
  %472 = vadd.xlane.f32.xlu0 %v471
  %v473 = vpop.xlane.xlu0 %472
  %v474 = vadd.f32 %v452, %v40
  %v475 = vadd.f32 %v455, %v41
  %v476 = vadd.f32 %v458, %v42
  %v477 = vadd.f32 %v461, %v43
  %v478 = vadd.f32 %v464, %v44
  %v479 = vadd.f32 %v467, %v45
  %v480 = vadd.f32 %v470, %v46
  %v481 = vadd.f32 %v473, %v47
  %vm482 = vcmp.gt.f32.partialorder %v474, 0.0
  %vm483 = vcmp.gt.f32.partialorder %v475, 0.0
  %vm484 = vcmp.gt.f32.partialorder %v476, 0.0
  %vm485 = vcmp.gt.f32.partialorder %v477, 0.0
  %vm486 = vcmp.gt.f32.partialorder %v478, 0.0
  %vm487 = vcmp.gt.f32.partialorder %v479, 0.0
  %vm488 = vcmp.gt.f32.partialorder %v480, 0.0
  %vm489 = vcmp.gt.f32.partialorder %v481, 0.0
  %v490 = vrsqrt.pop %v474
  %v491 = vrsqrt.pop %v475
  %v492 = vrsqrt.pop %v476
  %v493 = vrsqrt.pop %v477
  %v494 = vrsqrt.pop %v478
  %v495 = vrsqrt.pop %v479
  %v496 = vrsqrt.pop %v480
  %v497 = vrsqrt.pop %v481
  %v498 = vsel %vm482, %v490, 0.0
  %v499 = vsel %vm483, %v491, 0.0
  %v500 = vsel %vm484, %v492, 0.0
  %v501 = vsel %vm485, %v493, 0.0
  %v502 = vsel %vm486, %v494, 0.0
  %v503 = vsel %vm487, %v495, 0.0
  %v504 = vsel %vm488, %v496, 0.0
  %v505 = vsel %vm489, %v497, 0.0
  %507 = vset.pattern.permute.xlu0 0
  %508 = vperm.xlu0 %507, %v498
  %v509 = vpop.permute.xlu0 %508
  %512 = vset.pattern.permute.xlu0 0
  %513 = vperm.xlu0 %512, %v499
  %v514 = vpop.permute.xlu0 %513
  %517 = vset.pattern.permute.xlu0 0
  %518 = vperm.xlu0 %517, %v500
  %v519 = vpop.permute.xlu0 %518
  %522 = vset.pattern.permute.xlu0 0
  %523 = vperm.xlu0 %522, %v501
  %v524 = vpop.permute.xlu0 %523
  %527 = vset.pattern.permute.xlu0 0
  %528 = vperm.xlu0 %527, %v502
  %v529 = vpop.permute.xlu0 %528
  %532 = vset.pattern.permute.xlu0 0
  %533 = vperm.xlu0 %532, %v503
  %v534 = vpop.permute.xlu0 %533
  %537 = vset.pattern.permute.xlu0 0
  %538 = vperm.xlu0 %537, %v504
  %v539 = vpop.permute.xlu0 %538
  %542 = vset.pattern.permute.xlu0 0
  %543 = vperm.xlu0 %542, %v505
  %v544 = vpop.permute.xlu0 %543
  %v546 = vmul.f32 %v411, %v509
  %v547 = vmul.f32 %v416, %v514
  %v548 = vmul.f32 %v421, %v519
  %v549 = vmul.f32 %v426, %v524
  %v550 = vmul.f32 %v431, %v529
  %v551 = vmul.f32 %v436, %v534
  %v552 = vmul.f32 %v441, %v539
  %v553 = vmul.f32 %v446, %v544
  %555 = vset.pattern.permute.xlu0 0
  %556 = vperm.xlu0 %555, %v40
  %v557 = vpop.permute.xlu0 %556
  %560 = vset.pattern.permute.xlu0 0
  %561 = vperm.xlu0 %560, %v41
  %v562 = vpop.permute.xlu0 %561
  %565 = vset.pattern.permute.xlu0 0
  %566 = vperm.xlu0 %565, %v42
  %v567 = vpop.permute.xlu0 %566
  %570 = vset.pattern.permute.xlu0 0
  %571 = vperm.xlu0 %570, %v43
  %v572 = vpop.permute.xlu0 %571
  %575 = vset.pattern.permute.xlu0 0
  %576 = vperm.xlu0 %575, %v44
  %v577 = vpop.permute.xlu0 %576
  %580 = vset.pattern.permute.xlu0 0
  %581 = vperm.xlu0 %580, %v45
  %v582 = vpop.permute.xlu0 %581
  %585 = vset.pattern.permute.xlu0 0
  %586 = vperm.xlu0 %585, %v46
  %v587 = vpop.permute.xlu0 %586
  %590 = vset.pattern.permute.xlu0 0
  %591 = vperm.xlu0 %590, %v47
  %v592 = vpop.permute.xlu0 %591
  %v594 = vmul.f32 %v557, %v546
  %v595 = vmul.f32 %v562, %v547
  %v596 = vmul.f32 %v567, %v548
  %v597 = vmul.f32 %v572, %v549
  %v598 = vmul.f32 %v577, %v550
  %v599 = vmul.f32 %v582, %v551
  %v600 = vmul.f32 %v587, %v552
  %v601 = vmul.f32 %v592, %v553
  %v603 = vsel %vm449, %v308, 0
  %v606 = vsel %vm449, %v309, 0
  %v609 = vsel %vm449, %v310, 0
  %v612 = vsel %vm449, %v311, 0
  %v615 = vsel %vm449, %v312, 0
  %v618 = vsel %vm449, %v313, 0
  %v621 = vsel %vm449, %v314, 0
  %v624 = vsel %vm449, %v315, 0
  %626 = vmatprep.subr.mxu0 0.0
  %627 = vmatpush1.msra.mxu0 0.0
  %628 = vmatprep.subr.mxu0 0.0
  %629 = vmatpush1.msra.mxu0 0.0
  %630 = vmatprep.subr.mxu0 0.0
  %631 = vmatpush1.msra.mxu0 0.0
  %632 = vmatprep.subr.mxu0 0.0
  %633 = vmatpush1.msra.mxu0 0.0
  %634 = vmatprep.subr.mxu0 0.0
  %635 = vmatpush1.msra.mxu0 0.0
  %636 = vmatprep.subr.mxu0 0.0
  %637 = vmatpush1.msra.mxu0 0.0
  %638 = vmatprep.subr.mxu0 0.0
  %639 = vmatpush1.msra.mxu0 0.0
  %640 = vmatprep.subr.mxu0 0.0
  %641 = vmatpush1.msra.mxu0 0.0
  %642 = vmatprep.subr.mxu0 0.0
  %643 = vmatpush1.msra.mxu0 %v553
  %644 = vmatprep.subr.mxu0 0.0
  %645 = vmatpush1.msra.mxu0 %v552
  %646 = vmatprep.subr.mxu0 0.0
  %647 = vmatpush1.msra.mxu0 %v551
  %648 = vmatprep.subr.mxu0 0.0
  %649 = vmatpush1.msra.mxu0 %v550
  %650 = vmatprep.subr.mxu0 0.0
  %651 = vmatpush1.msra.mxu0 %v549
  %652 = vmatprep.subr.mxu0 0.0
  %653 = vmatpush1.msra.mxu0 %v548
  %654 = vmatprep.subr.mxu0 0.0
  %655 = vmatpush1.msra.mxu0 %v547
  %656 = vmatprep.subr.mxu0 0.0
  %657 = vmatpush1.msra.mxu0 %v546
  %658 = vmatprep.subr.mxu0 0.0
  %659 = vmatpush2.msra.mxu0 0.0
  %660 = vmatprep.subr.mxu0 0.0
  %661 = vmatpush2.msra.mxu0 0.0
  %662 = vmatprep.subr.mxu0 0.0
  %663 = vmatpush2.msra.mxu0 0.0
  %664 = vmatprep.subr.mxu0 0.0
  %665 = vmatpush2.msra.mxu0 0.0
  %666 = vmatprep.subr.mxu0 0.0
  %667 = vmatpush2.msra.mxu0 0.0
  %668 = vmatprep.subr.mxu0 0.0
  %669 = vmatpush2.msra.mxu0 0.0
  %670 = vmatprep.subr.mxu0 0.0
  %671 = vmatpush2.msra.mxu0 0.0
  %672 = vmatprep.subr.mxu0 0.0
  %673 = vmatpush2.msra.mxu0 0.0
  %674 = vmatprep.subr.mxu0 0.0
  %675 = vmatpush2.msra.mxu0 0.0
  %676 = vmatprep.subr.mxu0 0.0
  %677 = vmatpush2.msra.mxu0 0.0
  %678 = vmatprep.subr.mxu0 0.0
  %679 = vmatpush2.msra.mxu0 0.0
  %680 = vmatprep.subr.mxu0 0.0
  %681 = vmatpush2.msra.mxu0 0.0
  %682 = vmatprep.subr.mxu0 0.0
  %683 = vmatpush2.msra.mxu0 0.0
  %684 = vmatprep.subr.mxu0 0.0
  %685 = vmatpush2.msra.mxu0 0.0
  %686 = vmatprep.subr.mxu0 0.0
  %687 = vmatpush2.msra.mxu0 0.0
  %688 = vmatprep.subr.mxu0 0.0
  %689 = vmatpush2.msra.mxu0 0.0
  %690 = vmatprep.mubr.f32.mxu0 0.0
  %691 = vmatmul.mubr.f32.gmra.mxu0 %v603
  %v692 = vpop.f32.mrf.mxu0
  %v693 = vadd.f32 %v594, %v692
  %v694 = vpop.f32.mrf.mxu0
  %695 = vmatprep.mubr.f32.mxu0 0.0
  %696 = vmatmul.mubr.f32.gmra.mxu0 %v606
  %v697 = vpop.f32.mrf.mxu0
  %v698 = vadd.f32 %v595, %v697
  %v699 = vpop.f32.mrf.mxu0
  %700 = vmatprep.mubr.f32.mxu0 0.0
  %701 = vmatmul.mubr.f32.gmra.mxu0 %v609
  %v702 = vpop.f32.mrf.mxu0
  %v703 = vadd.f32 %v596, %v702
  %v704 = vpop.f32.mrf.mxu0
  %705 = vmatprep.mubr.f32.mxu0 0.0
  %706 = vmatmul.mubr.f32.gmra.mxu0 %v612
  %v707 = vpop.f32.mrf.mxu0
  %v708 = vadd.f32 %v597, %v707
  %v709 = vpop.f32.mrf.mxu0
  %710 = vmatprep.mubr.f32.mxu0 0.0
  %711 = vmatmul.mubr.f32.gmra.mxu0 %v615
  %v712 = vpop.f32.mrf.mxu0
  %v713 = vadd.f32 %v598, %v712
  %v714 = vpop.f32.mrf.mxu0
  %715 = vmatprep.mubr.f32.mxu0 0.0
  %716 = vmatmul.mubr.f32.gmra.mxu0 %v618
  %v717 = vpop.f32.mrf.mxu0
  %v718 = vadd.f32 %v599, %v717
  %v719 = vpop.f32.mrf.mxu0
  %720 = vmatprep.mubr.f32.mxu0 0.0
  %721 = vmatmul.mubr.f32.gmra.mxu0 %v621
  %v722 = vpop.f32.mrf.mxu0
  %v723 = vadd.f32 %v600, %v722
  %v724 = vpop.f32.mrf.mxu0
  %725 = vmatprep.mubr.f32.mxu0 0.0
  %726 = vmatmul.mubr.f32.gmra.mxu0 %v624
  %v727 = vpop.f32.mrf.mxu0
  %v728 = vadd.f32 %v601, %v727
  %v729 = vpop.f32.mrf.mxu0
  %730 = vdwg.mxu0
  %v731 = vmul.f32 %v509, %v693
  %v732 = vmul.f32 %v514, %v698
  %v733 = vmul.f32 %v519, %v703
  %v734 = vmul.f32 %v524, %v708
  %v735 = vmul.f32 %v529, %v713
  %v736 = vmul.f32 %v534, %v718
  %v737 = vmul.f32 %v539, %v723
  %v738 = vmul.f32 %v544, %v728
  %v739 = vld [vmem:[%s4] sm:$0x1]
  %v741 = vlaneseq
  %v742 = vshrl.u32 %v741, 7
  %v743 = vsub.s32 0, %v742
  %v744 = vrot.slane %v739, %v743
  %v746 = vadd.f32 %v731, %v744
  %v747 = vadd.f32 %v732, %v744
  %v748 = vadd.f32 %v733, %v744
  %v749 = vadd.f32 %v734, %v744
  %v750 = vadd.f32 %v735, %v744
  %v751 = vadd.f32 %v736, %v744
  %v752 = vadd.f32 %v737, %v744
  %v753 = vadd.f32 %v738, %v744
  %v754 = vmax.f32 %v746, 0.0
  %v755 = vmax.f32 %v747, 0.0
  %v756 = vmax.f32 %v748, 0.0
  %v757 = vmax.f32 %v749, 0.0
  %v758 = vmax.f32 %v750, 0.0
  %v759 = vmax.f32 %v751, 0.0
  %v760 = vmax.f32 %v752, 0.0
  %v761 = vmax.f32 %v753, 0.0
  %v762 = vmul.f32 %v754, %v754
  %v763 = vmul.f32 %v755, %v755
  %v764 = vmul.f32 %v756, %v756
  %v765 = vmul.f32 %v757, %v757
  %v766 = vmul.f32 %v758, %v758
  %v767 = vmul.f32 %v759, %v759
  %v768 = vmul.f32 %v760, %v760
  %v769 = vmul.f32 %v761, %v761
  %v770 = vsel %vm56, %v762, 0.0
  %771 = vadd.xlane.f32.xlu0 %v770
  %v772 = vpop.xlane.xlu0 %771
  %v773 = vsel %vm56, %v763, 0.0
  %774 = vadd.xlane.f32.xlu0 %v773
  %v775 = vpop.xlane.xlu0 %774
  %v776 = vsel %vm56, %v764, 0.0
  %777 = vadd.xlane.f32.xlu0 %v776
  %v778 = vpop.xlane.xlu0 %777
  %v779 = vsel %vm56, %v765, 0.0
  %780 = vadd.xlane.f32.xlu0 %v779
  %v781 = vpop.xlane.xlu0 %780
  %v782 = vsel %vm56, %v766, 0.0
  %783 = vadd.xlane.f32.xlu0 %v782
  %v784 = vpop.xlane.xlu0 %783
  %v785 = vsel %vm56, %v767, 0.0
  %786 = vadd.xlane.f32.xlu0 %v785
  %v787 = vpop.xlane.xlu0 %786
  %v788 = vsel %vm56, %v768, 0.0
  %789 = vadd.xlane.f32.xlu0 %v788
  %v790 = vpop.xlane.xlu0 %789
  %v791 = vsel %vm56, %v769, 0.0
  %792 = vadd.xlane.f32.xlu0 %v791
  %v793 = vpop.xlane.xlu0 %792
  %v794 = vmax.f32 %v772, 1e-16
  %v795 = vmax.f32 %v775, 1e-16
  %v796 = vmax.f32 %v778, 1e-16
  %v797 = vmax.f32 %v781, 1e-16
  %v798 = vmax.f32 %v784, 1e-16
  %v799 = vmax.f32 %v787, 1e-16
  %v800 = vmax.f32 %v790, 1e-16
  %v801 = vmax.f32 %v793, 1e-16
  %v802 = vrsqrt.pop %v794
  %v803 = vrsqrt.pop %v795
  %v804 = vrsqrt.pop %v796
  %v805 = vrsqrt.pop %v797
  %v806 = vrsqrt.pop %v798
  %v807 = vrsqrt.pop %v799
  %v808 = vrsqrt.pop %v800
  %v809 = vrsqrt.pop %v801
  %v810 = vmul.f32 %v754, %v802
  %v811 = vmul.f32 %v755, %v803
  %v812 = vmul.f32 %v756, %v804
  %v813 = vmul.f32 %v757, %v805
  %v814 = vmul.f32 %v758, %v806
  %v815 = vmul.f32 %v759, %v807
  %v816 = vmul.f32 %v760, %v808
  %v817 = vmul.f32 %v761, %v809
  %v819 = vsel %vm56, %v810, 0
  %v822 = vsel %vm56, %v811, 0
  %v825 = vsel %vm56, %v812, 0
  %v828 = vsel %vm56, %v813, 0
  %v831 = vsel %vm56, %v814, 0
  %v834 = vsel %vm56, %v815, 0
  %v837 = vsel %vm56, %v816, 0
  %v840 = vsel %vm56, %v817, 0
  %842 = vmatprep.subr.mxu0 0.0
  %843 = vmatpush1.xpose.msra.mxu0 0.0
  %844 = vmatprep.subr.mxu0 0.0
  %845 = vmatpush1.xpose.msra.mxu0 0.0
  %846 = vmatprep.subr.mxu0 0.0
  %847 = vmatpush1.xpose.msra.mxu0 0.0
  %848 = vmatprep.subr.mxu0 0.0
  %849 = vmatpush1.xpose.msra.mxu0 0.0
  %850 = vmatprep.subr.mxu0 0.0
  %851 = vmatpush1.xpose.msra.mxu0 0.0
  %852 = vmatprep.subr.mxu0 0.0
  %853 = vmatpush1.xpose.msra.mxu0 0.0
  %854 = vmatprep.subr.mxu0 0.0
  %855 = vmatpush1.xpose.msra.mxu0 0.0
  %856 = vmatprep.subr.mxu0 0.0
  %857 = vmatpush1.xpose.msra.mxu0 0.0
  %858 = vmatprep.subr.mxu0 0.0
  %859 = vmatpush1.xpose.msra.mxu0 %v840
  %860 = vmatprep.subr.mxu0 0.0
  %861 = vmatpush1.xpose.msra.mxu0 %v837
  %862 = vmatprep.subr.mxu0 0.0
  %863 = vmatpush1.xpose.msra.mxu0 %v834
  %864 = vmatprep.subr.mxu0 0.0
  %865 = vmatpush1.xpose.msra.mxu0 %v831
  %866 = vmatprep.subr.mxu0 0.0
  %867 = vmatpush1.xpose.msra.mxu0 %v828
  %868 = vmatprep.subr.mxu0 0.0
  %869 = vmatpush1.xpose.msra.mxu0 %v825
  %870 = vmatprep.subr.mxu0 0.0
  %871 = vmatpush1.xpose.msra.mxu0 %v822
  %872 = vmatprep.subr.mxu0 0.0
  %873 = vmatpush1.xpose.msra.mxu0 %v819
  %874 = vmatprep.subr.mxu0 0.0
  %875 = vmatpush2.xpose.msra.mxu0 0.0
  %876 = vmatprep.subr.mxu0 0.0
  %877 = vmatpush2.xpose.msra.mxu0 0.0
  %878 = vmatprep.subr.mxu0 0.0
  %879 = vmatpush2.xpose.msra.mxu0 0.0
  %880 = vmatprep.subr.mxu0 0.0
  %881 = vmatpush2.xpose.msra.mxu0 0.0
  %882 = vmatprep.subr.mxu0 0.0
  %883 = vmatpush2.xpose.msra.mxu0 0.0
  %884 = vmatprep.subr.mxu0 0.0
  %885 = vmatpush2.xpose.msra.mxu0 0.0
  %886 = vmatprep.subr.mxu0 0.0
  %887 = vmatpush2.xpose.msra.mxu0 0.0
  %888 = vmatprep.subr.mxu0 0.0
  %889 = vmatpush2.xpose.msra.mxu0 0.0
  %890 = vmatprep.subr.mxu0 0.0
  %891 = vmatpush2.xpose.msra.mxu0 0.0
  %892 = vmatprep.subr.mxu0 0.0
  %893 = vmatpush2.xpose.msra.mxu0 0.0
  %894 = vmatprep.subr.mxu0 0.0
  %895 = vmatpush2.xpose.msra.mxu0 0.0
  %896 = vmatprep.subr.mxu0 0.0
  %897 = vmatpush2.xpose.msra.mxu0 0.0
  %898 = vmatprep.subr.mxu0 0.0
  %899 = vmatpush2.xpose.msra.mxu0 0.0
  %900 = vmatprep.subr.mxu0 0.0
  %901 = vmatpush2.xpose.msra.mxu0 0.0
  %902 = vmatprep.subr.mxu0 0.0
  %903 = vmatpush2.xpose.msra.mxu0 0.0
  %904 = vmatprep.subr.mxu0 0.0
  %905 = vmatpush2.xpose.msra.mxu0 0.0
  %906 = vmatprep.mubr.f32.mxu0 0.0
  %907 = vmatmul.mubr.f32.gmra.mxu0 %v819
  %v908 = vpop.f32.mrf.mxu0
  %v909 = vadd.f32 0.0, %v908
  %v910 = vpop.f32.mrf.mxu0
  %911 = vmatprep.mubr.f32.mxu0 0.0
  %912 = vmatmul.mubr.f32.gmra.mxu0 %v822
  %v913 = vpop.f32.mrf.mxu0
  %v914 = vadd.f32 0.0, %v913
  %v915 = vpop.f32.mrf.mxu0
  %916 = vmatprep.mubr.f32.mxu0 0.0
  %917 = vmatmul.mubr.f32.gmra.mxu0 %v825
  %v918 = vpop.f32.mrf.mxu0
  %v919 = vadd.f32 0.0, %v918
  %v920 = vpop.f32.mrf.mxu0
  %921 = vmatprep.mubr.f32.mxu0 0.0
  %922 = vmatmul.mubr.f32.gmra.mxu0 %v828
  %v923 = vpop.f32.mrf.mxu0
  %v924 = vadd.f32 0.0, %v923
  %v925 = vpop.f32.mrf.mxu0
  %926 = vmatprep.mubr.f32.mxu0 0.0
  %927 = vmatmul.mubr.f32.gmra.mxu0 %v831
  %v928 = vpop.f32.mrf.mxu0
  %v929 = vadd.f32 0.0, %v928
  %v930 = vpop.f32.mrf.mxu0
  %931 = vmatprep.mubr.f32.mxu0 0.0
  %932 = vmatmul.mubr.f32.gmra.mxu0 %v834
  %v933 = vpop.f32.mrf.mxu0
  %v934 = vadd.f32 0.0, %v933
  %v935 = vpop.f32.mrf.mxu0
  %936 = vmatprep.mubr.f32.mxu0 0.0
  %937 = vmatmul.mubr.f32.gmra.mxu0 %v837
  %v938 = vpop.f32.mrf.mxu0
  %v939 = vadd.f32 0.0, %v938
  %v940 = vpop.f32.mrf.mxu0
  %941 = vmatprep.mubr.f32.mxu0 0.0
  %942 = vmatmul.mubr.f32.gmra.mxu0 %v840
  %v943 = vpop.f32.mrf.mxu0
  %v944 = vadd.f32 0.0, %v943
  %v945 = vpop.f32.mrf.mxu0
  %946 = vdwg.mxu0
  %vm947 = vcmp.ge.f32.partialorder %v909, 0.1
  %vm948 = vcmp.ge.f32.partialorder %v914, 0.1
  %vm949 = vcmp.ge.f32.partialorder %v919, 0.1
  %vm950 = vcmp.ge.f32.partialorder %v924, 0.1
  %vm951 = vcmp.ge.f32.partialorder %v929, 0.1
  %vm952 = vcmp.ge.f32.partialorder %v934, 0.1
  %vm953 = vcmp.ge.f32.partialorder %v939, 0.1
  %vm954 = vcmp.ge.f32.partialorder %v944, 0.1
  %vm955 = vmpackc.low %vm948, %vm947
  %vm956 = vmpackc.low %vm950, %vm949
  %vm957 = vmpackc.even %vm956, %vm955
  %vm958 = vmpackc.low %vm952, %vm951
  %vm959 = vmpackc.low %vm954, %vm953
  %vm960 = vmpackc.even %vm959, %vm958
  %vm961 = vmand %vm38, %vm957
  %vm962 = vmand %vm39, %vm960
  %v963 = vsel %vm961, 16843009, 0
  %v964 = vsel %vm962, 16843009, 0
  %v965 = vunpack.c.0.s8 %v963
  %v966 = vunpack.c.1.s8 %v963
  %v967 = vunpack.c.2.s8 %v963
  %v968 = vunpack.c.3.s8 %v963
  %v969 = vunpack.c.0.s8 %v964
  %v970 = vunpack.c.1.s8 %v964
  %v971 = vunpack.c.2.s8 %v964
  %v972 = vunpack.c.3.s8 %v964
  %v973 = vpack.c.b16 %v965, %v965
  %v974 = vpack.c.b8 %v973, %v973
  %v975 = vpack.c.b16 %v966, %v966
  %v976 = vpack.c.b8 %v975, %v975
  %v977 = vpack.c.b16 %v967, %v967
  %v978 = vpack.c.b8 %v977, %v977
  %v979 = vpack.c.b16 %v968, %v968
  %v980 = vpack.c.b8 %v979, %v979
  %v981 = vpack.c.b16 %v969, %v969
  %v982 = vpack.c.b8 %v981, %v981
  %v983 = vpack.c.b16 %v970, %v970
  %v984 = vpack.c.b8 %v983, %v983
  %v985 = vpack.c.b16 %v971, %v971
  %v986 = vpack.c.b8 %v985, %v985
  %v987 = vpack.c.b16 %v972, %v972
  %v988 = vpack.c.b8 %v987, %v987
  %vm989 = vnez %v974
  %vm990 = vnez %v976
  %vm991 = vnez %v978
  %vm992 = vnez %v980
  %vm993 = vnez %v982
  %vm994 = vnez %v984
  %vm995 = vnez %v986
  %vm996 = vnez %v988
  %v997 = vsel %vm989, 16843009, 0
  %v998 = vsel %vm990, 16843009, 0
  %v999 = vsel %vm991, 16843009, 0
  %v1000 = vsel %vm992, 16843009, 0
  %v1001 = vsel %vm993, 16843009, 0
  %v1002 = vsel %vm994, 16843009, 0
  %v1003 = vsel %vm995, 16843009, 0
  %v1004 = vsel %vm996, 16843009, 0
  %v1005 = vunpack.c.0.s8 %v997
  %v1006 = vunpack.c.0.s8 %v998
  %v1007 = vunpack.c.0.s8 %v999
  %v1008 = vunpack.c.0.s8 %v1000
  %v1009 = vunpack.c.0.s8 %v1001
  %v1010 = vunpack.c.0.s8 %v1002
  %v1011 = vunpack.c.0.s8 %v1003
  %v1012 = vunpack.c.0.s8 %v1004
  %vm1013 = vcmp.ne.s32.totalorder %v1005, 0
  %vm1014 = vcmp.ne.s32.totalorder %v1006, 0
  %vm1015 = vcmp.ne.s32.totalorder %v1007, 0
  %vm1016 = vcmp.ne.s32.totalorder %v1008, 0
  %vm1017 = vcmp.ne.s32.totalorder %v1009, 0
  %vm1018 = vcmp.ne.s32.totalorder %v1010, 0
  %vm1019 = vcmp.ne.s32.totalorder %v1011, 0
  %vm1020 = vcmp.ne.s32.totalorder %v1012, 0
  %v1021 = vsel %vm1013, %v909, 0.0
  %v1022 = vsel %vm1014, %v914, 0.0
  %v1023 = vsel %vm1015, %v919, 0.0
  %v1024 = vsel %vm1016, %v924, 0.0
  %v1025 = vsel %vm1017, %v929, 0.0
  %v1026 = vsel %vm1018, %v934, 0.0
  %v1027 = vsel %vm1019, %v939, 0.0
  %v1028 = vsel %vm1020, %v944, 0.0
  %v1029 = vld [vmem:[%s5] sm:$0xff]
  %v1030 = vld [vmem:[%s5 + $0x8] sm:$0xff]
  %v1031 = vld [vmem:[%s5 + $0x10] sm:$0xff]
  %v1032 = vld [vmem:[%s5 + $0x18] sm:$0xff]
  %v1034 = vsel %vm56, %v754, 0
  %v1037 = vsel %vm56, %v755, 0
  %v1040 = vsel %vm56, %v756, 0
  %v1043 = vsel %vm56, %v757, 0
  %v1046 = vsel %vm56, %v758, 0
  %v1049 = vsel %vm56, %v759, 0
  %v1052 = vsel %vm56, %v760, 0
  %v1055 = vsel %vm56, %v761, 0
  %1057 = vmatprep.subr.mxu0 0.0
  %1058 = vmatpush1.msra.mxu0 0.0
  %1059 = vmatprep.subr.mxu0 0.0
  %1060 = vmatpush1.msra.mxu0 0.0
  %1061 = vmatprep.subr.mxu0 0.0
  %1062 = vmatpush1.msra.mxu0 0.0
  %1063 = vmatprep.subr.mxu0 0.0
  %1064 = vmatpush1.msra.mxu0 0.0
  %1065 = vmatprep.subr.mxu0 0.0
  %1066 = vmatpush1.msra.mxu0 0.0
  %1067 = vmatprep.subr.mxu0 0.0
  %1068 = vmatpush1.msra.mxu0 0.0
  %1069 = vmatprep.subr.mxu0 0.0
  %1070 = vmatpush1.msra.mxu0 0.0
  %1071 = vmatprep.subr.mxu0 0.0
  %1072 = vmatpush1.msra.mxu0 0.0
  %1073 = vmatprep.subr.mxu0 0.0
  %1074 = vmatpush1.msra.mxu0 0.0
  %1075 = vmatprep.subr.mxu0 0.0
  %1076 = vmatpush1.msra.mxu0 0.0
  %1077 = vmatprep.subr.mxu0 0.0
  %1078 = vmatpush1.msra.mxu0 0.0
  %1079 = vmatprep.subr.mxu0 0.0
  %1080 = vmatpush1.msra.mxu0 0.0
  %1081 = vmatprep.subr.mxu0 0.0
  %1082 = vmatpush1.msra.mxu0 %v1032
  %1083 = vmatprep.subr.mxu0 0.0
  %1084 = vmatpush1.msra.mxu0 %v1031
  %1085 = vmatprep.subr.mxu0 0.0
  %1086 = vmatpush1.msra.mxu0 %v1030
  %1087 = vmatprep.subr.mxu0 0.0
  %1088 = vmatpush1.msra.mxu0 %v1029
  %1089 = vmatprep.subr.mxu0 0.0
  %1090 = vmatpush2.msra.mxu0 0.0
  %1091 = vmatprep.subr.mxu0 0.0
  %1092 = vmatpush2.msra.mxu0 0.0
  %1093 = vmatprep.subr.mxu0 0.0
  %1094 = vmatpush2.msra.mxu0 0.0
  %1095 = vmatprep.subr.mxu0 0.0
  %1096 = vmatpush2.msra.mxu0 0.0
  %1097 = vmatprep.subr.mxu0 0.0
  %1098 = vmatpush2.msra.mxu0 0.0
  %1099 = vmatprep.subr.mxu0 0.0
  %1100 = vmatpush2.msra.mxu0 0.0
  %1101 = vmatprep.subr.mxu0 0.0
  %1102 = vmatpush2.msra.mxu0 0.0
  %1103 = vmatprep.subr.mxu0 0.0
  %1104 = vmatpush2.msra.mxu0 0.0
  %1105 = vmatprep.subr.mxu0 0.0
  %1106 = vmatpush2.msra.mxu0 0.0
  %1107 = vmatprep.subr.mxu0 0.0
  %1108 = vmatpush2.msra.mxu0 0.0
  %1109 = vmatprep.subr.mxu0 0.0
  %1110 = vmatpush2.msra.mxu0 0.0
  %1111 = vmatprep.subr.mxu0 0.0
  %1112 = vmatpush2.msra.mxu0 0.0
  %1113 = vmatprep.subr.mxu0 0.0
  %1114 = vmatpush2.msra.mxu0 0.0
  %1115 = vmatprep.subr.mxu0 0.0
  %1116 = vmatpush2.msra.mxu0 0.0
  %1117 = vmatprep.subr.mxu0 0.0
  %1118 = vmatpush2.msra.mxu0 0.0
  %1119 = vmatprep.subr.mxu0 0.0
  %1120 = vmatpush2.msra.mxu0 0.0
  %1121 = vmatprep.mubr.f32.mxu0 0.0
  %1122 = vmatmul.mubr.f32.gmra.mxu0 %v1034
  %v1123 = vpop.f32.mrf.mxu0
  %v1124 = vadd.f32 0.0, %v1123
  %v1125 = vpop.f32.mrf.mxu0
  %1126 = vmatprep.mubr.f32.mxu0 0.0
  %1127 = vmatmul.mubr.f32.gmra.mxu0 %v1037
  %v1128 = vpop.f32.mrf.mxu0
  %v1129 = vadd.f32 0.0, %v1128
  %v1130 = vpop.f32.mrf.mxu0
  %1131 = vmatprep.mubr.f32.mxu0 0.0
  %1132 = vmatmul.mubr.f32.gmra.mxu0 %v1040
  %v1133 = vpop.f32.mrf.mxu0
  %v1134 = vadd.f32 0.0, %v1133
  %v1135 = vpop.f32.mrf.mxu0
  %1136 = vmatprep.mubr.f32.mxu0 0.0
  %1137 = vmatmul.mubr.f32.gmra.mxu0 %v1043
  %v1138 = vpop.f32.mrf.mxu0
  %v1139 = vadd.f32 0.0, %v1138
  %v1140 = vpop.f32.mrf.mxu0
  %1141 = vmatprep.mubr.f32.mxu0 0.0
  %1142 = vmatmul.mubr.f32.gmra.mxu0 %v1046
  %v1143 = vpop.f32.mrf.mxu0
  %v1144 = vadd.f32 0.0, %v1143
  %v1145 = vpop.f32.mrf.mxu0
  %1146 = vmatprep.mubr.f32.mxu0 0.0
  %1147 = vmatmul.mubr.f32.gmra.mxu0 %v1049
  %v1148 = vpop.f32.mrf.mxu0
  %v1149 = vadd.f32 0.0, %v1148
  %v1150 = vpop.f32.mrf.mxu0
  %1151 = vmatprep.mubr.f32.mxu0 0.0
  %1152 = vmatmul.mubr.f32.gmra.mxu0 %v1052
  %v1153 = vpop.f32.mrf.mxu0
  %v1154 = vadd.f32 0.0, %v1153
  %v1155 = vpop.f32.mrf.mxu0
  %1156 = vmatprep.mubr.f32.mxu0 0.0
  %1157 = vmatmul.mubr.f32.gmra.mxu0 %v1055
  %v1158 = vpop.f32.mrf.mxu0
  %v1159 = vadd.f32 0.0, %v1158
  %v1160 = vpop.f32.mrf.mxu0
  %1161 = vdwg.mxu0
  %v1162 = vsel %vm449, %v1021, 0.0
  %1163 = vadd.xlane.f32.xlu0 %v1162
  %v1164 = vpop.xlane.xlu0 %1163
  %v1165 = vsel %vm449, %v1022, 0.0
  %1166 = vadd.xlane.f32.xlu0 %v1165
  %v1167 = vpop.xlane.xlu0 %1166
  %v1168 = vsel %vm449, %v1023, 0.0
  %1169 = vadd.xlane.f32.xlu0 %v1168
  %v1170 = vpop.xlane.xlu0 %1169
  %v1171 = vsel %vm449, %v1024, 0.0
  %1172 = vadd.xlane.f32.xlu0 %v1171
  %v1173 = vpop.xlane.xlu0 %1172
  %v1174 = vsel %vm449, %v1025, 0.0
  %1175 = vadd.xlane.f32.xlu0 %v1174
  %v1176 = vpop.xlane.xlu0 %1175
  %v1177 = vsel %vm449, %v1026, 0.0
  %1178 = vadd.xlane.f32.xlu0 %v1177
  %v1179 = vpop.xlane.xlu0 %1178
  %v1180 = vsel %vm449, %v1027, 0.0
  %1181 = vadd.xlane.f32.xlu0 %v1180
  %v1182 = vpop.xlane.xlu0 %1181
  %v1183 = vsel %vm449, %v1028, 0.0
  %1184 = vadd.xlane.f32.xlu0 %v1183
  %v1185 = vpop.xlane.xlu0 %1184
  %v1186 = vadd.f32 %v1164, %v40
  %v1187 = vadd.f32 %v1167, %v41
  %v1188 = vadd.f32 %v1170, %v42
  %v1189 = vadd.f32 %v1173, %v43
  %v1190 = vadd.f32 %v1176, %v44
  %v1191 = vadd.f32 %v1179, %v45
  %v1192 = vadd.f32 %v1182, %v46
  %v1193 = vadd.f32 %v1185, %v47
  %vm1194 = vcmp.gt.f32.partialorder %v1186, 0.0
  %vm1195 = vcmp.gt.f32.partialorder %v1187, 0.0
  %vm1196 = vcmp.gt.f32.partialorder %v1188, 0.0
  %vm1197 = vcmp.gt.f32.partialorder %v1189, 0.0
  %vm1198 = vcmp.gt.f32.partialorder %v1190, 0.0
  %vm1199 = vcmp.gt.f32.partialorder %v1191, 0.0
  %vm1200 = vcmp.gt.f32.partialorder %v1192, 0.0
  %vm1201 = vcmp.gt.f32.partialorder %v1193, 0.0
  %v1202 = vrsqrt.pop %v1186
  %v1203 = vrsqrt.pop %v1187
  %v1204 = vrsqrt.pop %v1188
  %v1205 = vrsqrt.pop %v1189
  %v1206 = vrsqrt.pop %v1190
  %v1207 = vrsqrt.pop %v1191
  %v1208 = vrsqrt.pop %v1192
  %v1209 = vrsqrt.pop %v1193
  %v1210 = vsel %vm1194, %v1202, 0.0
  %v1211 = vsel %vm1195, %v1203, 0.0
  %v1212 = vsel %vm1196, %v1204, 0.0
  %v1213 = vsel %vm1197, %v1205, 0.0
  %v1214 = vsel %vm1198, %v1206, 0.0
  %v1215 = vsel %vm1199, %v1207, 0.0
  %v1216 = vsel %vm1200, %v1208, 0.0
  %v1217 = vsel %vm1201, %v1209, 0.0
  %1219 = vset.pattern.permute.xlu0 0
  %1220 = vperm.xlu0 %1219, %v1210
  %v1221 = vpop.permute.xlu0 %1220
  %1224 = vset.pattern.permute.xlu0 0
  %1225 = vperm.xlu0 %1224, %v1211
  %v1226 = vpop.permute.xlu0 %1225
  %1229 = vset.pattern.permute.xlu0 0
  %1230 = vperm.xlu0 %1229, %v1212
  %v1231 = vpop.permute.xlu0 %1230
  %1234 = vset.pattern.permute.xlu0 0
  %1235 = vperm.xlu0 %1234, %v1213
  %v1236 = vpop.permute.xlu0 %1235
  %1239 = vset.pattern.permute.xlu0 0
  %1240 = vperm.xlu0 %1239, %v1214
  %v1241 = vpop.permute.xlu0 %1240
  %1244 = vset.pattern.permute.xlu0 0
  %1245 = vperm.xlu0 %1244, %v1215
  %v1246 = vpop.permute.xlu0 %1245
  %1249 = vset.pattern.permute.xlu0 0
  %1250 = vperm.xlu0 %1249, %v1216
  %v1251 = vpop.permute.xlu0 %1250
  %1254 = vset.pattern.permute.xlu0 0
  %1255 = vperm.xlu0 %1254, %v1217
  %v1256 = vpop.permute.xlu0 %1255
  %v1258 = vmul.f32 %v1124, %v1221
  %v1259 = vmul.f32 %v1129, %v1226
  %v1260 = vmul.f32 %v1134, %v1231
  %v1261 = vmul.f32 %v1139, %v1236
  %v1262 = vmul.f32 %v1144, %v1241
  %v1263 = vmul.f32 %v1149, %v1246
  %v1264 = vmul.f32 %v1154, %v1251
  %v1265 = vmul.f32 %v1159, %v1256
  %v1266 = vmul.f32 %v557, %v1258
  %v1267 = vmul.f32 %v562, %v1259
  %v1268 = vmul.f32 %v567, %v1260
  %v1269 = vmul.f32 %v572, %v1261
  %v1270 = vmul.f32 %v577, %v1262
  %v1271 = vmul.f32 %v582, %v1263
  %v1272 = vmul.f32 %v587, %v1264
  %v1273 = vmul.f32 %v592, %v1265
  %v1275 = vsel %vm449, %v1021, 0
  %v1278 = vsel %vm449, %v1022, 0
  %v1281 = vsel %vm449, %v1023, 0
  %v1284 = vsel %vm449, %v1024, 0
  %v1287 = vsel %vm449, %v1025, 0
  %v1290 = vsel %vm449, %v1026, 0
  %v1293 = vsel %vm449, %v1027, 0
  %v1296 = vsel %vm449, %v1028, 0
  %1298 = vmatprep.subr.mxu0 0.0
  %1299 = vmatpush1.msra.mxu0 0.0
  %1300 = vmatprep.subr.mxu0 0.0
  %1301 = vmatpush1.msra.mxu0 0.0
  %1302 = vmatprep.subr.mxu0 0.0
  %1303 = vmatpush1.msra.mxu0 0.0
  %1304 = vmatprep.subr.mxu0 0.0
  %1305 = vmatpush1.msra.mxu0 0.0
  %1306 = vmatprep.subr.mxu0 0.0
  %1307 = vmatpush1.msra.mxu0 0.0
  %1308 = vmatprep.subr.mxu0 0.0
  %1309 = vmatpush1.msra.mxu0 0.0
  %1310 = vmatprep.subr.mxu0 0.0
  %1311 = vmatpush1.msra.mxu0 0.0
  %1312 = vmatprep.subr.mxu0 0.0
  %1313 = vmatpush1.msra.mxu0 0.0
  %1314 = vmatprep.subr.mxu0 0.0
  %1315 = vmatpush1.msra.mxu0 %v1265
  %1316 = vmatprep.subr.mxu0 0.0
  %1317 = vmatpush1.msra.mxu0 %v1264
  %1318 = vmatprep.subr.mxu0 0.0
  %1319 = vmatpush1.msra.mxu0 %v1263
  %1320 = vmatprep.subr.mxu0 0.0
  %1321 = vmatpush1.msra.mxu0 %v1262
  %1322 = vmatprep.subr.mxu0 0.0
  %1323 = vmatpush1.msra.mxu0 %v1261
  %1324 = vmatprep.subr.mxu0 0.0
  %1325 = vmatpush1.msra.mxu0 %v1260
  %1326 = vmatprep.subr.mxu0 0.0
  %1327 = vmatpush1.msra.mxu0 %v1259
  %1328 = vmatprep.subr.mxu0 0.0
  %1329 = vmatpush1.msra.mxu0 %v1258
  %1330 = vmatprep.subr.mxu0 0.0
  %1331 = vmatpush2.msra.mxu0 0.0
  %1332 = vmatprep.subr.mxu0 0.0
  %1333 = vmatpush2.msra.mxu0 0.0
  %1334 = vmatprep.subr.mxu0 0.0
  %1335 = vmatpush2.msra.mxu0 0.0
  %1336 = vmatprep.subr.mxu0 0.0
  %1337 = vmatpush2.msra.mxu0 0.0
  %1338 = vmatprep.subr.mxu0 0.0
  %1339 = vmatpush2.msra.mxu0 0.0
  %1340 = vmatprep.subr.mxu0 0.0
  %1341 = vmatpush2.msra.mxu0 0.0
  %1342 = vmatprep.subr.mxu0 0.0
  %1343 = vmatpush2.msra.mxu0 0.0
  %1344 = vmatprep.subr.mxu0 0.0
  %1345 = vmatpush2.msra.mxu0 0.0
  %1346 = vmatprep.subr.mxu0 0.0
  %1347 = vmatpush2.msra.mxu0 0.0
  %1348 = vmatprep.subr.mxu0 0.0
  %1349 = vmatpush2.msra.mxu0 0.0
  %1350 = vmatprep.subr.mxu0 0.0
  %1351 = vmatpush2.msra.mxu0 0.0
  %1352 = vmatprep.subr.mxu0 0.0
  %1353 = vmatpush2.msra.mxu0 0.0
  %1354 = vmatprep.subr.mxu0 0.0
  %1355 = vmatpush2.msra.mxu0 0.0
  %1356 = vmatprep.subr.mxu0 0.0
  %1357 = vmatpush2.msra.mxu0 0.0
  %1358 = vmatprep.subr.mxu0 0.0
  %1359 = vmatpush2.msra.mxu0 0.0
  %1360 = vmatprep.subr.mxu0 0.0
  %1361 = vmatpush2.msra.mxu0 0.0
  %1362 = vmatprep.mubr.f32.mxu0 0.0
  %1363 = vmatmul.mubr.f32.gmra.mxu0 %v1275
  %v1364 = vpop.f32.mrf.mxu0
  %v1365 = vadd.f32 %v1266, %v1364
  %v1366 = vpop.f32.mrf.mxu0
  %1367 = vmatprep.mubr.f32.mxu0 0.0
  %1368 = vmatmul.mubr.f32.gmra.mxu0 %v1278
  %v1369 = vpop.f32.mrf.mxu0
  %v1370 = vadd.f32 %v1267, %v1369
  %v1371 = vpop.f32.mrf.mxu0
  %1372 = vmatprep.mubr.f32.mxu0 0.0
  %1373 = vmatmul.mubr.f32.gmra.mxu0 %v1281
  %v1374 = vpop.f32.mrf.mxu0
  %v1375 = vadd.f32 %v1268, %v1374
  %v1376 = vpop.f32.mrf.mxu0
  %1377 = vmatprep.mubr.f32.mxu0 0.0
  %1378 = vmatmul.mubr.f32.gmra.mxu0 %v1284
  %v1379 = vpop.f32.mrf.mxu0
  %v1380 = vadd.f32 %v1269, %v1379
  %v1381 = vpop.f32.mrf.mxu0
  %1382 = vmatprep.mubr.f32.mxu0 0.0
  %1383 = vmatmul.mubr.f32.gmra.mxu0 %v1287
  %v1384 = vpop.f32.mrf.mxu0
  %v1385 = vadd.f32 %v1270, %v1384
  %v1386 = vpop.f32.mrf.mxu0
  %1387 = vmatprep.mubr.f32.mxu0 0.0
  %1388 = vmatmul.mubr.f32.gmra.mxu0 %v1290
  %v1389 = vpop.f32.mrf.mxu0
  %v1390 = vadd.f32 %v1271, %v1389
  %v1391 = vpop.f32.mrf.mxu0
  %1392 = vmatprep.mubr.f32.mxu0 0.0
  %1393 = vmatmul.mubr.f32.gmra.mxu0 %v1293
  %v1394 = vpop.f32.mrf.mxu0
  %v1395 = vadd.f32 %v1272, %v1394
  %v1396 = vpop.f32.mrf.mxu0
  %1397 = vmatprep.mubr.f32.mxu0 0.0
  %1398 = vmatmul.mubr.f32.gmra.mxu0 %v1296
  %v1399 = vpop.f32.mrf.mxu0
  %v1400 = vadd.f32 %v1273, %v1399
  %v1401 = vpop.f32.mrf.mxu0
  %1402 = vdwg.mxu0
  %v1403 = vmul.f32 %v1221, %v1365
  %v1404 = vmul.f32 %v1226, %v1370
  %v1405 = vmul.f32 %v1231, %v1375
  %v1406 = vmul.f32 %v1236, %v1380
  %v1407 = vmul.f32 %v1241, %v1385
  %v1408 = vmul.f32 %v1246, %v1390
  %v1409 = vmul.f32 %v1251, %v1395
  %v1410 = vmul.f32 %v1256, %v1400
  %v1411 = vld [vmem:[%s6] sm:$0x1]
  %v1413 = vlaneseq
  %v1414 = vshrl.u32 %v1413, 7
  %v1415 = vsub.s32 0, %v1414
  %v1416 = vrot.slane %v1411, %v1415
  %v1418 = vadd.f32 %v1403, %v1416
  %v1419 = vadd.f32 %v1404, %v1416
  %v1420 = vadd.f32 %v1405, %v1416
  %v1421 = vadd.f32 %v1406, %v1416
  %v1422 = vadd.f32 %v1407, %v1416
  %v1423 = vadd.f32 %v1408, %v1416
  %v1424 = vadd.f32 %v1409, %v1416
  %v1425 = vadd.f32 %v1410, %v1416
  %1426 = vst [vmem:[%s7] sm:$0xff] %v1418
  %1427 = vst [vmem:[%s7 + $0x8] sm:$0xff] %v1419
  %1428 = vst [vmem:[%s7 + $0x10] sm:$0xff] %v1420
  %1429 = vst [vmem:[%s7 + $0x18] sm:$0xff] %v1421
  %1430 = vst [vmem:[%s7 + $0x20] sm:$0xff] %v1422
  %1431 = vst [vmem:[%s7 + $0x28] sm:$0xff] %v1423
  %1432 = vst [vmem:[%s7 + $0x30] sm:$0xff] %v1424
  %1433 = vst [vmem:[%s7 + $0x38] sm:$0xff] %v1425
  // Predicated region
  $region30: #{gnnguard_forward.1} parent=0 // pred_check
    _
  $region31: #{gnnguard_forward.1} parent=0 // pred_check_branch
    %1435 = sbr.rel (0) target = $region33
  $region32: #{gnnguard_forward.1} parent=0 // pred_region
    _
  $region33: #{gnnguard_forward.1} parent=0 // pred_fallthru
    _
  // Predicated region
  $region34: #{gnnguard_forward.1} parent=0 // pred_check
    _
  $region35: #{gnnguard_forward.1} parent=0 // pred_check_branch
    %1437 = sbr.rel (0) target = $region37
  $region36: #{gnnguard_forward.1} parent=0 // pred_region
    _
  $region37: #{gnnguard_forward.1} parent=0 // pred_fallthru
    _

</llo_original>
